<compile_context>
chip_gen: v7x
topology: tpu7x:2x2x1
jax: 0.10.0
libtpu: 0.0.40
codegen_flags: <defaults>
</compile_context>

<pallas_src>
import numpy as np
import jax
import jax.numpy as jnp
from jax.experimental import pallas as pl
from jax.experimental.pallas import tpu as pltpu


D_MODEL = 512     # d_model used by the diffusion transformer
MAX_LEN = 16      # max_len default from the module
DROPOUT_P = 0.1   # identity at inference


# ----------------------------- Pallas kernel --------------------------------

def _posenc_kernel(x_ref, pe_ref, o_ref):
    # x: (S, B, D), pe: (S, 1, D)  ->  broadcast-add over the batch dim (VPU).
    # TODO(synk): train-mode dropout (p=0.1) would need pltpu.prng_seed +
    # pltpu.stateful_bernoulli; inference treats nn.Dropout as identity.
    o_ref[...] = x_ref[...] + pe_ref[...]


# ----------------------------- host-side pieces ------------------------------

def make_positional_table(d_model=D_MODEL, max_len=MAX_LEN):
    """Replicates the PyTorch __init__ buffer: pe of shape (max_len, 1, d_model)."""
    position = np.arange(max_len, dtype=np.float32)[:, None]
    div_term = np.exp(np.arange(0, d_model, 2, dtype=np.float32)
                      * (-np.log(10000.0) / d_model))
    pe = np.zeros((max_len, d_model), dtype=np.float32)
    pe[:, 0::2] = np.sin(position * div_term)
    pe[:, 1::2] = np.cos(position * div_term)
    return jnp.asarray(pe[:, None, :])                 # (max_len, 1, d_model)


def positional_encoding(x, pe):
    """x: (S, B, D) float32.  Returns x + pe[:S] (eval-mode dropout = identity)."""
    S, B, D = x.shape
    pe_s = pe[:S]                                      # static slice: pe[:x.shape[0]]

    # One grid step, whole arrays resident in VMEM (a few tens of KiB).
    return pl.pallas_call(
        _posenc_kernel,
        out_shape=jax.ShapeDtypeStruct((S, B, D), x.dtype),
        grid=(1,),
        in_specs=[
            pl.BlockSpec((S, B, D), lambda i: (0, 0, 0)),   # activations
            pl.BlockSpec((S, 1, D), lambda i: (0, 0, 0)),   # pe rows (bcast in-kernel)
        ],
        out_specs=pl.BlockSpec((S, B, D), lambda i: (0, 0, 0)),
        compiler_params=pltpu.CompilerParams(dimension_semantics=("arbitrary",)),
    )(x, pe_s)


# ----------------------------- main ------------------------------------------

if __name__ == "__main__":
    S, B = 8, 2                                        # seq (<= max_len), batch

    key = jax.random.PRNGKey(0)
    x = jax.random.normal(key, (S, B, D_MODEL), jnp.float32)

    pe = make_positional_table(D_MODEL, MAX_LEN)

    fwd = jax.jit(positional_encoding)
    out = fwd(x, pe)
    jax.block_until_ready(out)

    # Pure-JAX reference: x + pe[:S] (dropout is identity at eval).
    ref = x + pe[:S]
    assert out.shape == (S, B, D_MODEL), out.shape
    assert out.dtype == jnp.float32
    np.testing.assert_allclose(np.asarray(out), np.asarray(ref), rtol=1e-6, atol=1e-6)

    print("KERNEL_OK")
</pallas_src>

<mosaic_0001>
module attributes {stable_mosaic.version = 11 : i64} {
  func.func @_posenc_kernel(%arg0: i32, %arg1: memref<8x2x512xf32, #tpu.memory_space<vmem>>, %arg2: memref<8x1x512xf32, #tpu.memory_space<vmem>>, %arg3: memref<8x2x512xf32, #tpu.memory_space<vmem>>) attributes {dimension_semantics = [#tpu.dimension_semantics<arbitrary>], iteration_bounds = array<i64: 1>, scalar_prefetch = 0 : i64, scratch_operands = 0 : i64, tpu.core_type = #tpu.core_type<tc>, window_params = [{pipeline_mode = #tpu.pipeline_mode<synchronous>, transform_indices = @transform_0, window_bounds = array<i64: 8, 2, 512>}, {pipeline_mode = #tpu.pipeline_mode<synchronous>, transform_indices = @transform_1, window_bounds = array<i64: 8, 1, 512>}, {pipeline_mode = #tpu.pipeline_mode<synchronous>, transform_indices = @transform_2, window_bounds = array<i64: 8, 2, 512>}]} {
    %c0 = arith.constant 0 : index
    %c0_0 = arith.constant 0 : index
    %c0_1 = arith.constant 0 : index
    %0 = vector.load %arg1[%c0, %c0_0, %c0_1] : memref<8x2x512xf32, #tpu.memory_space<vmem>>, vector<8x2x512xf32>
    %c0_2 = arith.constant 0 : index
    %c0_3 = arith.constant 0 : index
    %c0_4 = arith.constant 0 : index
    %1 = vector.load %arg2[%c0_2, %c0_3, %c0_4] : memref<8x1x512xf32, #tpu.memory_space<vmem>>, vector<8x1x512xf32>
    %2 = vector.broadcast %1 : vector<8x1x512xf32> to vector<8x2x512xf32>
    %3 = arith.addf %0, %2 : vector<8x2x512xf32>
    %c0_5 = arith.constant 0 : index
    %c0_6 = arith.constant 0 : index
    %c0_7 = arith.constant 0 : index
    %4 = vector.load %arg3[%c0_5, %c0_6, %c0_7] : memref<8x2x512xf32, #tpu.memory_space<vmem>>, vector<8x2x512xf32>
    tpu.vector_store %arg3[%c0_5, %c0_6, %c0_7], %3 {strides = array<i32>} : memref<8x2x512xf32, #tpu.memory_space<vmem>>, vector<8x2x512xf32>,
    return
  }
  func.func @transform_0(%arg0: i32) -> (i32, i32, i32) {
    %c0_i32 = arith.constant 0 : i32
    %c0_i32_0 = arith.constant 0 : i32
    %c0_i32_1 = arith.constant 0 : i32
    %c0_i32_2 = arith.constant 0 : i32
    return %c0_i32, %c0_i32_0, %c0_i32_1 : i32, i32, i32
  }
  func.func @transform_1(%arg0: i32) -> (i32, i32, i32) {
    %c0_i32 = arith.constant 0 : i32
    %c0_i32_0 = arith.constant 0 : i32
    %c0_i32_1 = arith.constant 0 : i32
    %c0_i32_2 = arith.constant 0 : i32
    return %c0_i32, %c0_i32_0, %c0_i32_1 : i32, i32, i32
  }
  func.func @transform_2(%arg0: i32) -> (i32, i32, i32) {
    %c0_i32 = arith.constant 0 : i32
    %c0_i32_0 = arith.constant 0 : i32
    %c0_i32_1 = arith.constant 0 : i32
    %c0_i32_2 = arith.constant 0 : i32
    return %c0_i32, %c0_i32_0, %c0_i32_1 : i32, i32, i32
  }
}

</mosaic_0001>

<llo_original>
// kernel: positional_encoding.1
$region0: #{positional_encoding.1}
  #allocation0 [shape = 'u32[]', space=smem, size = 0x4, offset = 0x4, fixed_abs, tag = 'smem constant byte address 0x4 - core index']
  #allocation1 [shape = 'u32[144,128]{1,0:T(1,128)}', space=vmem, size = 0x12000, scoped, tag = 'internal scratch']
  %s0 = inlined_call_operand.hbm [shape: f32[8,2,512], index: 0, kind: input, shape index: {}]
  %s1 = inlined_call_operand.vmem [shape: f32[8,1,512], index: 1, kind: input, shape index: {}]
  %s2 = inlined_call_operand.hbm [shape: f32[8,2,512], index: 2, kind: output, shape index: {}]
  %s3 = sld [smem:[#allocation0]]
  $region22: #{positional_encoding.1} parent=0
    _
  %s5 = ssub.s32 1, %s3
  %s6 = scalar_select 0, %s5, %s3
  $region1: #{positional_encoding.1} parent=0
    #allocation2 [shape = 'u8[32768]{0}', space=vmem, size = 0x8000, scoped, tag = 'input window, operand 0, single buffered']
    #allocation3 [shape = 's32[1]{0}', space=sflag, size = 0x4, scoped, tag = 'scoped memory for positional_encoding.1']
    #allocation4 [shape = 's32[1]{0}', space=sflag, size = 0x4, scoped, tag = 'scoped memory for positional_encoding.1']
    #allocation5 [shape = 'u8[32768]{0}', space=vmem, size = 0x8000, scoped, tag = 'output window, operand 0, single buffered']
    %7 = vsyncpa [#allocation3], 0
    %8 = vsyncpa [#allocation4], 0
    // Predicated region
    $region2: #{positional_encoding.1} parent=1 // pred_check
      _
    $region3: #{positional_encoding.1} parent=1 // pred_check_branch
      %10 = sbr.rel (0) target = $region5
    $region4: #{positional_encoding.1} parent=1 // pred_region
      %s12 = ssub.s32 1024, 1024
      %13 = vsyncadd [#allocation3], %s12
      %s14 = sshll.u32 [#allocation2], 4
      %s15 = int_to_ptr.vmem [resolvable:$true] %s14
      %20 = dma.hbm_to_vmem [thread:$0]  %s0, 1024, %s15, [#allocation3], 128, 128, 8
    $region5: #{positional_encoding.1} parent=1 // pred_fallthru
      _
    // Predicated region
    $region6: #{positional_encoding.1} parent=1 // pred_check
      _
    $region7: #{positional_encoding.1} parent=1 // pred_check_branch
      %22 = sbr.rel (0) target = $region9
    $region8: #{positional_encoding.1} parent=1 // pred_region
      _
    $region9: #{positional_encoding.1} parent=1 // pred_fallthru
      _
    // Predicated region
    $region10: #{positional_encoding.1} parent=1 // pred_check
      _
    $region11: #{positional_encoding.1} parent=1 // pred_check_branch
      %24 = sbr.rel (0) target = $region13
    $region12: #{positional_encoding.1} parent=1 // pred_region
      %25 = dma.done [#allocation3], 1024
    $region13: #{positional_encoding.1} parent=1 // pred_fallthru
      _
    %v26 = vld [vmem:[#allocation2] sm:$0xff]
    %v27 = vld [vmem:[#allocation2 + $0x8] sm:$0xff]
    %v28 = vld [vmem:[#allocation2 + $0x10] sm:$0xff]
    %v29 = vld [vmem:[#allocation2 + $0x18] sm:$0xff]
    %v30 = vld [vmem:[#allocation2 + $0x20] sm:$0xff]
    %v31 = vld [vmem:[#allocation2 + $0x28] sm:$0xff]
    %v32 = vld [vmem:[#allocation2 + $0x30] sm:$0xff]
    %v33 = vld [vmem:[#allocation2 + $0x38] sm:$0xff]
    %v34 = vld [vmem:[%s1] sm:$0xf]
    %v35 = vld [vmem:[%s1 + $0x4] sm:$0xf]
    %v36 = vld [vmem:[%s1 + $0x8] sm:$0xf]
    %v37 = vld [vmem:[%s1 + $0xc] sm:$0xf]
    %v38 = vld [vmem:[%s1 + $0x10] sm:$0xf]
    %v39 = vld [vmem:[%s1 + $0x14] sm:$0xf]
    %v40 = vld [vmem:[%s1 + $0x18] sm:$0xf]
    %v41 = vld [vmem:[%s1 + $0x1c] sm:$0xf]
    %v50 = vlaneseq
    %v51 = vshrl.u32 %v50, 7
    %v52 = vsub.s32 0, %v51
    %v53 = vrot.slane %v34, %v52
    %v54 = vlaneseq
    %v55 = vshrl.u32 %v54, 7
    %v56 = vsub.s32 1, %v55
    %v57 = vrot.slane %v34, %v56
    %v58 = vlaneseq
    %v59 = vshrl.u32 %v58, 7
    %v60 = vsub.s32 2, %v59
    %v61 = vrot.slane %v34, %v60
    %v62 = vlaneseq
    %v63 = vshrl.u32 %v62, 7
    %v64 = vsub.s32 3, %v63
    %v65 = vrot.slane %v34, %v64
    %v66 = vlaneseq
    %v67 = vshrl.u32 %v66, 7
    %v68 = vsub.s32 0, %v67
    %v69 = vrot.slane %v35, %v68
    %v70 = vlaneseq
    %v71 = vshrl.u32 %v70, 7
    %v72 = vsub.s32 1, %v71
    %v73 = vrot.slane %v35, %v72
    %v74 = vlaneseq
    %v75 = vshrl.u32 %v74, 7
    %v76 = vsub.s32 2, %v75
    %v77 = vrot.slane %v35, %v76
    %v78 = vlaneseq
    %v79 = vshrl.u32 %v78, 7
    %v80 = vsub.s32 3, %v79
    %v81 = vrot.slane %v35, %v80
    %v82 = vlaneseq
    %v83 = vshrl.u32 %v82, 7
    %v84 = vsub.s32 0, %v83
    %v85 = vrot.slane %v36, %v84
    %v86 = vlaneseq
    %v87 = vshrl.u32 %v86, 7
    %v88 = vsub.s32 1, %v87
    %v89 = vrot.slane %v36, %v88
    %v90 = vlaneseq
    %v91 = vshrl.u32 %v90, 7
    %v92 = vsub.s32 2, %v91
    %v93 = vrot.slane %v36, %v92
    %v94 = vlaneseq
    %v95 = vshrl.u32 %v94, 7
    %v96 = vsub.s32 3, %v95
    %v97 = vrot.slane %v36, %v96
    %v98 = vlaneseq
    %v99 = vshrl.u32 %v98, 7
    %v100 = vsub.s32 0, %v99
    %v101 = vrot.slane %v37, %v100
    %v102 = vlaneseq
    %v103 = vshrl.u32 %v102, 7
    %v104 = vsub.s32 1, %v103
    %v105 = vrot.slane %v37, %v104
    %v106 = vlaneseq
    %v107 = vshrl.u32 %v106, 7
    %v108 = vsub.s32 2, %v107
    %v109 = vrot.slane %v37, %v108
    %v110 = vlaneseq
    %v111 = vshrl.u32 %v110, 7
    %v112 = vsub.s32 3, %v111
    %v113 = vrot.slane %v37, %v112
    %v114 = vlaneseq
    %v115 = vshrl.u32 %v114, 7
    %v116 = vsub.s32 0, %v115
    %v117 = vrot.slane %v38, %v116
    %v118 = vlaneseq
    %v119 = vshrl.u32 %v118, 7
    %v120 = vsub.s32 1, %v119
    %v121 = vrot.slane %v38, %v120
    %v122 = vlaneseq
    %v123 = vshrl.u32 %v122, 7
    %v124 = vsub.s32 2, %v123
    %v125 = vrot.slane %v38, %v124
    %v126 = vlaneseq
    %v127 = vshrl.u32 %v126, 7
    %v128 = vsub.s32 3, %v127
    %v129 = vrot.slane %v38, %v128
    %v130 = vlaneseq
    %v131 = vshrl.u32 %v130, 7
    %v132 = vsub.s32 0, %v131
    %v133 = vrot.slane %v39, %v132
    %v134 = vlaneseq
    %v135 = vshrl.u32 %v134, 7
    %v136 = vsub.s32 1, %v135
    %v137 = vrot.slane %v39, %v136
    %v138 = vlaneseq
    %v139 = vshrl.u32 %v138, 7
    %v140 = vsub.s32 2, %v139
    %v141 = vrot.slane %v39, %v140
    %v142 = vlaneseq
    %v143 = vshrl.u32 %v142, 7
    %v144 = vsub.s32 3, %v143
    %v145 = vrot.slane %v39, %v144
    %v146 = vlaneseq
    %v147 = vshrl.u32 %v146, 7
    %v148 = vsub.s32 0, %v147
    %v149 = vrot.slane %v40, %v148
    %v150 = vlaneseq
    %v151 = vshrl.u32 %v150, 7
    %v152 = vsub.s32 1, %v151
    %v153 = vrot.slane %v40, %v152
    %v154 = vlaneseq
    %v155 = vshrl.u32 %v154, 7
    %v156 = vsub.s32 2, %v155
    %v157 = vrot.slane %v40, %v156
    %v158 = vlaneseq
    %v159 = vshrl.u32 %v158, 7
    %v160 = vsub.s32 3, %v159
    %v161 = vrot.slane %v40, %v160
    %v162 = vlaneseq
    %v163 = vshrl.u32 %v162, 7
    %v164 = vsub.s32 0, %v163
    %v165 = vrot.slane %v41, %v164
    %v166 = vlaneseq
    %v167 = vshrl.u32 %v166, 7
    %v168 = vsub.s32 1, %v167
    %v169 = vrot.slane %v41, %v168
    %v170 = vlaneseq
    %v171 = vshrl.u32 %v170, 7
    %v172 = vsub.s32 2, %v171
    %v173 = vrot.slane %v41, %v172
    %v174 = vlaneseq
    %v175 = vshrl.u32 %v174, 7
    %v176 = vsub.s32 3, %v175
    %v177 = vrot.slane %v41, %v176
    %v178 = vcombine.low %v53, %v57
    %v179 = vcombine.low %v61, %v65
    %v181 = vunpack.c.l.s4 1983009808
    %v182 = vunpack.c.0.s8 %v181
    %v183 = vlaneseq
    %v184 = vshrl.u32 %v183, 7
    %v185 = vsub.s32 %v182, %v184
    %v186 = vrot.slane %v178, %v185
    %v188 = vunpack.c.l.s4 1983009808
    %v189 = vunpack.c.0.s8 %v188
    %v190 = vlaneseq
    %v191 = vshrl.u32 %v190, 7
    %v192 = vsub.s32 %v189, %v191
    %v193 = vrot.slane %v179, %v192
    %v194 = vcombine.low %v186, %v193
    %v195 = vcombine.low %v69, %v73
    %v196 = vcombine.low %v77, %v81
    %v198 = vunpack.c.l.s4 1983009808
    %v199 = vunpack.c.0.s8 %v198
    %v200 = vlaneseq
    %v201 = vshrl.u32 %v200, 7
    %v202 = vsub.s32 %v199, %v201
    %v203 = vrot.slane %v195, %v202
    %v205 = vunpack.c.l.s4 1983009808
    %v206 = vunpack.c.0.s8 %v205
    %v207 = vlaneseq
    %v208 = vshrl.u32 %v207, 7
    %v209 = vsub.s32 %v206, %v208
    %v210 = vrot.slane %v196, %v209
    %v211 = vcombine.low %v203, %v210
    %v212 = vcombine.low %v85, %v89
    %v213 = vcombine.low %v93, %v97
    %v215 = vunpack.c.l.s4 1983009808
    %v216 = vunpack.c.0.s8 %v215
    %v217 = vlaneseq
    %v218 = vshrl.u32 %v217, 7
    %v219 = vsub.s32 %v216, %v218
    %v220 = vrot.slane %v212, %v219
    %v222 = vunpack.c.l.s4 1983009808
    %v223 = vunpack.c.0.s8 %v222
    %v224 = vlaneseq
    %v225 = vshrl.u32 %v224, 7
    %v226 = vsub.s32 %v223, %v225
    %v227 = vrot.slane %v213, %v226
    %v228 = vcombine.low %v220, %v227
    %v229 = vcombine.low %v101, %v105
    %v230 = vcombine.low %v109, %v113
    %v232 = vunpack.c.l.s4 1983009808
    %v233 = vunpack.c.0.s8 %v232
    %v234 = vlaneseq
    %v235 = vshrl.u32 %v234, 7
    %v236 = vsub.s32 %v233, %v235
    %v237 = vrot.slane %v229, %v236
    %v239 = vunpack.c.l.s4 1983009808
    %v240 = vunpack.c.0.s8 %v239
    %v241 = vlaneseq
    %v242 = vshrl.u32 %v241, 7
    %v243 = vsub.s32 %v240, %v242
    %v244 = vrot.slane %v230, %v243
    %v245 = vcombine.low %v237, %v244
    %v246 = vcombine.low %v117, %v121
    %v247 = vcombine.low %v125, %v129
    %v249 = vunpack.c.l.s4 1983009808
    %v250 = vunpack.c.0.s8 %v249
    %v251 = vlaneseq
    %v252 = vshrl.u32 %v251, 7
    %v253 = vsub.s32 %v250, %v252
    %v254 = vrot.slane %v246, %v253
    %v256 = vunpack.c.l.s4 1983009808
    %v257 = vunpack.c.0.s8 %v256
    %v258 = vlaneseq
    %v259 = vshrl.u32 %v258, 7
    %v260 = vsub.s32 %v257, %v259
    %v261 = vrot.slane %v247, %v260
    %v262 = vcombine.low %v254, %v261
    %v263 = vcombine.low %v133, %v137
    %v264 = vcombine.low %v141, %v145
    %v266 = vunpack.c.l.s4 1983009808
    %v267 = vunpack.c.0.s8 %v266
    %v268 = vlaneseq
    %v269 = vshrl.u32 %v268, 7
    %v270 = vsub.s32 %v267, %v269
    %v271 = vrot.slane %v263, %v270
    %v273 = vunpack.c.l.s4 1983009808
    %v274 = vunpack.c.0.s8 %v273
    %v275 = vlaneseq
    %v276 = vshrl.u32 %v275, 7
    %v277 = vsub.s32 %v274, %v276
    %v278 = vrot.slane %v264, %v277
    %v279 = vcombine.low %v271, %v278
    %v280 = vcombine.low %v149, %v153
    %v281 = vcombine.low %v157, %v161
    %v283 = vunpack.c.l.s4 1983009808
    %v284 = vunpack.c.0.s8 %v283
    %v285 = vlaneseq
    %v286 = vshrl.u32 %v285, 7
    %v287 = vsub.s32 %v284, %v286
    %v288 = vrot.slane %v280, %v287
    %v290 = vunpack.c.l.s4 1983009808
    %v291 = vunpack.c.0.s8 %v290
    %v292 = vlaneseq
    %v293 = vshrl.u32 %v292, 7
    %v294 = vsub.s32 %v291, %v293
    %v295 = vrot.slane %v281, %v294
    %v296 = vcombine.low %v288, %v295
    %v297 = vcombine.low %v165, %v169
    %v298 = vcombine.low %v173, %v177
    %v300 = vunpack.c.l.s4 1983009808
    %v301 = vunpack.c.0.s8 %v300
    %v302 = vlaneseq
    %v303 = vshrl.u32 %v302, 7
    %v304 = vsub.s32 %v301, %v303
    %v305 = vrot.slane %v297, %v304
    %v307 = vunpack.c.l.s4 1983009808
    %v308 = vunpack.c.0.s8 %v307
    %v309 = vlaneseq
    %v310 = vshrl.u32 %v309, 7
    %v311 = vsub.s32 %v308, %v310
    %v312 = vrot.slane %v298, %v311
    %v313 = vcombine.low %v305, %v312
    %v322 = vadd.f32 %v26, %v194
    %v323 = vadd.f32 %v27, %v211
    %v324 = vadd.f32 %v28, %v228
    %v325 = vadd.f32 %v29, %v245
    %v326 = vadd.f32 %v30, %v262
    %v327 = vadd.f32 %v31, %v279
    %v328 = vadd.f32 %v32, %v296
    %v329 = vadd.f32 %v33, %v313
    %330 = vst [vmem:[#allocation5] sm:$0xff] %v322
    %331 = vst [vmem:[#allocation5 + $0x8] sm:$0xff] %v323
    %332 = vst [vmem:[#allocation5 + $0x10] sm:$0xff] %v324
    %333 = vst [vmem:[#allocation5 + $0x18] sm:$0xff] %v325
    %334 = vst [vmem:[#allocation5 + $0x20] sm:$0xff] %v326
    %335 = vst [vmem:[#allocation5 + $0x28] sm:$0xff] %v327
    %336 = vst [vmem:[#allocation5 + $0x30] sm:$0xff] %v328
    %337 = vst [vmem:[#allocation5 + $0x38] sm:$0xff] %v329
    // Predicated region
    $region14: #{positional_encoding.1} parent=1 // pred_check
      _
    $region15: #{positional_encoding.1} parent=1 // pred_check_branch
      %339 = sbr.rel (0) target = $region17
    $region16: #{positional_encoding.1} parent=1 // pred_region
      %s341 = ssub.s32 1024, 1024
      %342 = vsyncadd [#allocation4], %s341
      %s343 = sshll.u32 [#allocation5], 4
      %s344 = int_to_ptr.vmem [resolvable:$true] %s343
      %349 = dma.vmem_to_hbm [thread:$0]  %s344, 1024, %s2, [#allocation4], 128, 128, 8
    $region17: #{positional_encoding.1} parent=1 // pred_fallthru
      _
    // Predicated region
    $region18: #{positional_encoding.1} parent=1 // pred_check
      _
    $region19: #{positional_encoding.1} parent=1 // pred_check_branch
      %351 = sbr.rel (0) target = $region21
    $region20: #{positional_encoding.1} parent=1 // pred_region
      %352 = dma.done [#allocation4], 1024
    $region21: #{positional_encoding.1} parent=1 // pred_fallthru
      _
    %353 = vsyncpa [#allocation3], 1
    %354 = vsyncpa [#allocation4], 1

</llo_original>
